<compile_context>
chip_gen: v5e
topology: v5e:2x2
jax: 0.10.0
libtpu: 0.0.40
codegen_flags: <defaults>
</compile_context>

<pallas_src>
import functools

import jax
import jax.numpy as jnp
from jax import lax
from jax.experimental import pallas as pl
from jax.experimental.pallas import tpu as pltpu


def _fold_lanes_to_128(v):
    """Sum 128-lane groups of v[..., W] (W a multiple of 128) into (..., 128).

    Log-depth tree of lane-aligned adds (no long serial chain, no XLU reduce).
    """
    w = v.shape[-1]
    assert w % 128 == 0, w
    rem = None
    while w > 128:
        ng = w // 128
        if ng % 2:  # peel the odd trailing 128-lane group
            tail = v[..., (ng - 1) * 128: ng * 128]
            rem = tail if rem is None else rem + tail
            w = (ng - 1) * 128
            v = v[..., :w]
        half = w // 2
        v = v[..., :half] + v[..., half:]
        w = half
    return v if rem is None else v + rem


def _ce2d_kernel(x_ref, t_ref, out_ref, *, hw, tile, tiles_per_split,
                 ignore_index):
    ps = pl.program_id(1)   # pixel split (parallel; megacore balance)
    i = pl.program_id(2)    # pixel tile within the split (reduction axis)

    @pl.when(i == 0)
    def _():
        out_ref[...] = jnp.zeros_like(out_ref)

    x = x_ref[...]                       # (n_blk, C, TP)
    if x.dtype != jnp.float32:           # bf16 logits supported: upcast in-kernel
        x = x.astype(jnp.float32)
    t = t_ref[...]                       # (n_blk, 1, TP) int32
    num_classes = x_ref.shape[1]

    # Global (unclamped) pixel-tile index.  The index_map clamps the DMA for
    # out-of-range tiles; this mask kills ragged-tail / out-of-range columns and
    # ignore_index pixels.  NOTE: this final mask must never be removed -- the
    # contents of OOB block columns are undefined.
    g = ps * tiles_per_split + i
    col = g * tile + lax.broadcasted_iota(jnp.int32, (1, 1, tile), 2)
    counted = jnp.logical_and(col < hw, t != ignore_index)          # (n_blk,1,TP)

    # Numerically stable log-sum-exp over the channel (sublane) axis.
    m = jnp.max(x, axis=1, keepdims=True)                           # (n_blk,1,TP)
    lse = m + jnp.log(jnp.sum(jnp.exp(x - m), axis=1, keepdims=True))

    # x[target, pixel] via one-hot compare; iota is only (1, C, 1) -- no C x TP
    # index tensor is materialized.
    cls = lax.broadcasted_iota(jnp.int32, (1, num_classes, 1), 1)
    x_t = jnp.sum(jnp.where(cls == t, x, 0.0), axis=1, keepdims=True)

    nll = jnp.where(counted, lse - x_t, 0.0)                        # (n_blk,1,TP)
    cnt = counted.astype(jnp.float32)

    # Narrow accumulation: tree-fold lanes to 128, reduce batch rows, and
    # accumulate into the resident (1, 256) output block
    # (lanes 0:128 = loss partials, lanes 128:256 = counted-pixel partials).
    loss128 = jnp.sum(_fold_lanes_to_128(nll[:, 0, :]), axis=0, keepdims=True)
    cnt128 = jnp.sum(_fold_lanes_to_128(cnt[:, 0, :]), axis=0, keepdims=True)
    out_ref[...] += jnp.concatenate([loss128, cnt128], axis=-1)     # (1, 256)


def cross_entropy_loss_2d(inputs, targets, *, ignore_index=-100,
                          target_step_bytes=2 * 1024 * 1024,
                          vmem_block_budget=36 * 1024 * 1024,
                          max_tile_lanes=256 * 1024):
    """inputs: (N, C, H, W) float (f32 or bf16), targets: (N, H, W) int.

    Returns the scalar mean cross-entropy over non-ignored pixels
    (== nn.NLLLoss2d(weight=None, size_average=True)(F.log_softmax(x), t)).
    """
    N, C, H, W = inputs.shape
    HW = H * W

    # Free reshapes only.
    x = inputs.reshape(N, C, HW)
    t = targets.reshape(N, 1, HW).astype(jnp.int32)

    x_bytes = int(inputs.dtype.itemsize)
    bpl_hbm = C * x_bytes + 4                        # HBM bytes / pixel / batch row
    # double-buffered blocks + ~f32 working temps, per pixel per batch row
    bpl_work = 2 * (C * x_bytes + 4) + (4 * C + 4) * 4

    # Lane tile: big enough that one step's DMA covers the ~0.35us per-step
    # overhead, bounded by the VMEM budget and by H*W itself.
    hw_groups = pl.cdiv(HW, 128)
    target_groups = pl.cdiv(target_step_bytes, bpl_hbm * 128)
    budget_groups = max(1, vmem_block_budget // (bpl_work * 128))
    lane_cap_groups = max(1, max_tile_lanes // 128)
    tile_groups = max(1, min(hw_groups, max(target_groups, 4),
                             budget_groups, lane_cap_groups))
    tile = tile_groups * 128
    num_tiles = pl.cdiv(HW, tile)

    # Small images: pull whole batch rows into the block so DMAs stay large.
    n_blk = 1
    if num_tiles == 1 and N > 1:
        for d in range(1, N + 1):
            if N % d:
                continue
            if d * tile_groups > budget_groups or d * tile > max_tile_lanes:
                break
            n_blk = d
            if d * tile * bpl_hbm >= target_step_bytes:
                break
    nb_blocks = N // n_blk

    # Megacore balance (v7x): when batch blocks alone cannot split evenly over
    # two TensorCores, add a size-2 parallel split of the pixel-tile axis.
    p_splits = 2 if (nb_blocks % 2 == 1 and num_tiles >= 2) else 1
    tiles_per_split = pl.cdiv(num_tiles, p_splits)

    if p_splits == 1:
        in_idx = lambda nb, ps, i: (nb, 0, i)
    else:
        last_tile = num_tiles - 1
        in_idx = lambda nb, ps, i: (
            nb, 0, jnp.minimum(ps * tiles_per_split + i, last_tile))
    out_idx = lambda nb, ps, i: (nb * p_splits + ps, 0, 0)

    # Right-sized VMEM limit from the actual footprint (<= 48 MiB for v7x).
    work_bytes = n_blk * tile * bpl_work
    vmem_limit = int(min(48 * 1024 * 1024, work_bytes + 8 * 1024 * 1024))

    kernel = functools.partial(_ce2d_kernel, hw=HW, tile=tile,
                               tiles_per_split=tiles_per_split,
                               ignore_index=ignore_index)

    out = pl.pallas_call(
        kernel,
        out_shape=jax.ShapeDtypeStruct((nb_blocks * p_splits, 1, 256),
                                       jnp.float32),
        grid_spec=pltpu.PrefetchScalarGridSpec(
            num_scalar_prefetch=0,
            grid=(nb_blocks, p_splits, tiles_per_split),
            in_specs=[
                pl.BlockSpec((n_blk, C, tile), in_idx),
                pl.BlockSpec((n_blk, 1, tile), in_idx),
            ],
            out_specs=pl.BlockSpec((None, 1, 256), out_idx),
        ),
        compiler_params=pltpu.CompilerParams(
            dimension_semantics=("parallel", "parallel", "arbitrary"),
            vmem_limit_bytes=vmem_limit,
        ),
    )(x, t)

    loss_sum = jnp.sum(out[..., :128])
    n_counted = jnp.sum(out[..., 128:])
    return loss_sum / n_counted


def _reference_loss(inputs, targets, ignore_index=-100):
    # Pure-JAX reference (log_softmax over channels + masked-mean NLL).
    x = inputs.astype(jnp.float32)
    logp = jax.nn.log_softmax(x, axis=1)
    t = targets.astype(jnp.int32)
    safe_t = jnp.clip(t, 0, x.shape[1] - 1)
    picked = jnp.take_along_axis(logp, safe_t[:, None, :, :], axis=1)[:, 0]
    mask = (t != ignore_index).astype(jnp.float32)
    return -jnp.sum(picked * mask) / jnp.sum(mask)


if __name__ == "__main__":
    key = jax.random.PRNGKey(0)
    k1, k2, k3, k4, k5 = jax.random.split(key, 5)

    # Main demo: (N, C, H, W) = (2, 4, 16, 16), f32 logits, no ignored pixels.
    N, C, H, W = 2, 4, 16, 16
    inputs = jax.random.normal(k1, (N, C, H, W), dtype=jnp.float32)
    targets = jax.random.randint(k2, (N, H, W), 0, C, dtype=jnp.int32)

    loss = jax.block_until_ready(cross_entropy_loss_2d(inputs, targets))
    ref = jax.block_until_ready(_reference_loss(inputs, targets))
    assert jnp.allclose(loss, ref, rtol=1e-5, atol=1e-5), (loss, ref)

    # bf16 logits (kernel upcasts in-kernel; halves the HBM read).
    loss_bf16 = jax.block_until_ready(
        cross_entropy_loss_2d(inputs.astype(jnp.bfloat16), targets))
    ref_bf16 = jax.block_until_ready(
        _reference_loss(inputs.astype(jnp.bfloat16), targets))
    assert jnp.allclose(loss_bf16, ref_bf16, rtol=1e-4, atol=1e-4), (loss_bf16,
                                                                     ref_bf16)

    # N=1 (pixel-split parallel axis), ragged tiles, clamped OOB tile and
    # ignore_index pixels; small target_step_bytes forces several pixel tiles.
    N2, C2, H2, W2 = 1, 3, 47, 48
    x2 = jax.random.normal(k3, (N2, C2, H2, W2), dtype=jnp.float32)
    t2 = jax.random.randint(k4, (N2, H2, W2), 0, C2, dtype=jnp.int32)
    t2 = jnp.where(jax.random.uniform(k5, (N2, H2, W2)) < 0.1, -100, t2)
    loss2 = jax.block_until_ready(
        cross_entropy_loss_2d(x2, t2, target_step_bytes=4096))
    ref2 = jax.block_until_ready(_reference_loss(x2, t2))
    assert jnp.allclose(loss2, ref2, rtol=1e-5, atol=1e-5), (loss2, ref2)

    print("KERNEL_OK")
</pallas_src>

<mosaic_0001>
module attributes {stable_mosaic.version = 11 : i64} {
  func.func @_ce2d_kernel(%arg0: i32, %arg1: i32, %arg2: i32, %arg3: memref<2x4x256xf32, #tpu.memory_space<vmem>>, %arg4: memref<2x1x256xi32, #tpu.memory_space<vmem>>, %arg5: memref<1x1x256xf32, #tpu.memory_space<vmem>>) attributes {dimension_semantics = [#tpu.dimension_semantics<parallel>, #tpu.dimension_semantics<parallel>, #tpu.dimension_semantics<arbitrary>], iteration_bounds = array<i64: 1, 1, 1>, scalar_prefetch = 0 : i64, scratch_operands = 0 : i64, tpu.core_type = #tpu.core_type<tc>, window_params = [{transform_indices = @transform_0, window_bounds = array<i64: 2, 4, 256>}, {transform_indices = @transform_1, window_bounds = array<i64: 2, 1, 256>}, {transform_indices = @transform_2, window_bounds = array<i64: 1, 1, 256>}]} {
    %c0_i32 = arith.constant 0 : i32
    %0 = arith.cmpi eq, %arg2, %c0_i32 : i32
    %1 = arith.extui %0 : i1 to i32
    %c0_i32_0 = arith.constant 0 : i32
    %2 = arith.cmpi ne, %1, %c0_i32_0 : i32
    scf.if %2 {
      %cst_19 = arith.constant 0.000000e+00 : f32
      %58 = vector.broadcast %cst_19 : f32 to vector<1x256xf32>
      %c0_20 = arith.constant 0 : index
      %c0_21 = arith.constant 0 : index
      %c0_22 = arith.constant 0 : index
      %59 = vector.load %arg5[%c0_20, %c0_21, %c0_22] : memref<1x1x256xf32, #tpu.memory_space<vmem>>, vector<1x1x256xf32>
      %60 = vector.shape_cast %59 : vector<1x1x256xf32> to vector<1x256xf32>
      %61 = vector.shape_cast %58 : vector<1x256xf32> to vector<1x1x256xf32>
      tpu.vector_store %arg5[%c0_20, %c0_21, %c0_22], %61 {strides = array<i32>} : memref<1x1x256xf32, #tpu.memory_space<vmem>>, vector<1x1x256xf32>,
    } else {
    }
    %c0 = arith.constant 0 : index
    %c0_1 = arith.constant 0 : index
    %c0_2 = arith.constant 0 : index
    %3 = vector.load %arg3[%c0, %c0_1, %c0_2] : memref<2x4x256xf32, #tpu.memory_space<vmem>>, vector<2x4x256xf32>
    %c0_3 = arith.constant 0 : index
    %c0_4 = arith.constant 0 : index
    %c0_5 = arith.constant 0 : index
    %4 = vector.load %arg4[%c0_3, %c0_4, %c0_5] : memref<2x1x256xi32, #tpu.memory_space<vmem>>, vector<2x1x256xi32>
    %c1_i32 = arith.constant 1 : i32
    %5 = arith.muli %arg1, %c1_i32 : i32
    %6 = arith.addi %5, %arg2 : i32
    %c256_i32 = arith.constant 256 : i32
    %7 = arith.muli %6, %c256_i32 : i32
    %8 = tpu.iota {dimensions = array<i32: 2>} : vector<1x1x256xi32>
    %9 = vector.broadcast %7 : i32 to vector<1x1x256xi32>
    %10 = arith.addi %9, %8 : vector<1x1x256xi32>
    %c256_i32_6 = arith.constant 256 : i32
    %11 = vector.broadcast %c256_i32_6 : i32 to vector<1x1x256xi32>
    %12 = arith.cmpi slt, %10, %11 : vector<1x1x256xi32>
    %c-100_i32 = arith.constant -100 : i32
    %13 = vector.broadcast %c-100_i32 : i32 to vector<2x1x256xi32>
    %14 = arith.cmpi ne, %4, %13 : vector<2x1x256xi32>
    %15 = vector.broadcast %12 : vector<1x1x256xi1> to vector<2x1x256xi1>
    %16 = arith.andi %15, %14 : vector<2x1x256xi1>
    %cst = arith.constant dense<0xFF800000> : vector<2x256xf32>
    %17 = vector.multi_reduction <maximumf>, %3, %cst [1] : vector<2x4x256xf32> to vector<2x256xf32>
    %18 = vector.shape_cast %17 : vector<2x256xf32> to vector<2x1x256xf32>
    %19 = vector.broadcast %18 : vector<2x1x256xf32> to vector<2x4x256xf32>
    %20 = arith.subf %3, %19 : vector<2x4x256xf32>
    %21 = math.exp %20 : vector<2x4x256xf32>
    %cst_7 = arith.constant dense<0.000000e+00> : vector<2x256xf32>
    %22 = vector.multi_reduction <add>, %21, %cst_7 [1] : vector<2x4x256xf32> to vector<2x256xf32>
    %23 = vector.shape_cast %22 : vector<2x256xf32> to vector<2x1x256xf32>
    %24 = math.log %23 : vector<2x1x256xf32>
    %25 = arith.addf %18, %24 : vector<2x1x256xf32>
    %26 = tpu.iota {dimensions = array<i32: 1>} : vector<1x4x1xi32>
    %27 = vector.broadcast %26 : vector<1x4x1xi32> to vector<2x4x256xi32>
    %28 = vector.broadcast %4 : vector<2x1x256xi32> to vector<2x4x256xi32>
    %29 = arith.cmpi eq, %27, %28 : vector<2x4x256xi32>
    %cst_8 = arith.constant 0.000000e+00 : f32
    %30 = vector.broadcast %cst_8 : f32 to vector<2x4x256xf32>
    %31 = arith.select %29, %3, %30 : vector<2x4x256xi1>, vector<2x4x256xf32>
    %cst_9 = arith.constant dense<0.000000e+00> : vector<2x256xf32>
    %32 = vector.multi_reduction <add>, %31, %cst_9 [1] : vector<2x4x256xf32> to vector<2x256xf32>
    %33 = vector.shape_cast %32 : vector<2x256xf32> to vector<2x1x256xf32>
    %34 = arith.subf %25, %33 : vector<2x1x256xf32>
    %cst_10 = arith.constant 0.000000e+00 : f32
    %35 = vector.broadcast %cst_10 : f32 to vector<2x1x256xf32>
    %36 = arith.select %16, %34, %35 : vector<2x1x256xi1>, vector<2x1x256xf32>
    %37 = arith.extui %16 : vector<2x1x256xi1> to vector<2x1x256xi32>
    %38 = arith.sitofp %37 : vector<2x1x256xi32> to vector<2x1x256xf32>
    %39 = vector.shape_cast %36 : vector<2x1x256xf32> to vector<2x256xf32>
    %40 = vector.extract_strided_slice %39 {offsets = [0, 0], sizes = [2, 128], strides = [1, 1]} : vector<2x256xf32> to vector<2x128xf32>
    %41 = vector.extract_strided_slice %39 {offsets = [0, 128], sizes = [2, 128], strides = [1, 1]} : vector<2x256xf32> to vector<2x128xf32>
    %42 = arith.addf %40, %41 : vector<2x128xf32>
    %cst_11 = arith.constant dense<0.000000e+00> : vector<128xf32>
    %43 = vector.multi_reduction <add>, %42, %cst_11 [0] : vector<2x128xf32> to vector<128xf32>
    %44 = vector.shape_cast %43 : vector<128xf32> to vector<1x128xf32>
    %45 = vector.shape_cast %38 : vector<2x1x256xf32> to vector<2x256xf32>
    %46 = vector.extract_strided_slice %45 {offsets = [0, 0], sizes = [2, 128], strides = [1, 1]} : vector<2x256xf32> to vector<2x128xf32>
    %47 = vector.extract_strided_slice %45 {offsets = [0, 128], sizes = [2, 128], strides = [1, 1]} : vector<2x256xf32> to vector<2x128xf32>
    %48 = arith.addf %46, %47 : vector<2x128xf32>
    %cst_12 = arith.constant dense<0.000000e+00> : vector<128xf32>
    %49 = vector.multi_reduction <add>, %48, %cst_12 [0] : vector<2x128xf32> to vector<128xf32>
    %50 = vector.shape_cast %49 : vector<128xf32> to vector<1x128xf32>
    %c0_13 = arith.constant 0 : index
    %c0_14 = arith.constant 0 : index
    %c0_15 = arith.constant 0 : index
    %51 = vector.load %arg5[%c0_13, %c0_14, %c0_15] : memref<1x1x256xf32, #tpu.memory_space<vmem>>, vector<1x1x256xf32>
    %52 = vector.shape_cast %51 : vector<1x1x256xf32> to vector<1x256xf32>
    %53 = tpu.concatenate %44, %50 in 1 : vector<1x128xf32>, vector<1x128xf32> -> vector<1x256xf32>
    %54 = arith.addf %52, %53 : vector<1x256xf32>
    %c0_16 = arith.constant 0 : index
    %c0_17 = arith.constant 0 : index
    %c0_18 = arith.constant 0 : index
    %55 = vector.load %arg5[%c0_16, %c0_17, %c0_18] : memref<1x1x256xf32, #tpu.memory_space<vmem>>, vector<1x1x256xf32>
    %56 = vector.shape_cast %55 : vector<1x1x256xf32> to vector<1x256xf32>
    %57 = vector.shape_cast %54 : vector<1x256xf32> to vector<1x1x256xf32>
    tpu.vector_store %arg5[%c0_16, %c0_17, %c0_18], %57 {strides = array<i32>} : memref<1x1x256xf32, #tpu.memory_space<vmem>>, vector<1x1x256xf32>,
    return
  }
  func.func @transform_0(%arg0: i32, %arg1: i32, %arg2: i32) -> (i32, i32, i32) {
    %c0_i32 = arith.constant 0 : i32
    %c0_i32_0 = arith.constant 0 : i32
    return %arg0, %c0_i32, %arg2 : i32, i32, i32
  }
  func.func @transform_1(%arg0: i32, %arg1: i32, %arg2: i32) -> (i32, i32, i32) {
    %c0_i32 = arith.constant 0 : i32
    %c0_i32_0 = arith.constant 0 : i32
    return %arg0, %c0_i32, %arg2 : i32, i32, i32
  }
  func.func @transform_2(%arg0: i32, %arg1: i32, %arg2: i32) -> (i32, i32, i32) {
    %c1_i32 = arith.constant 1 : i32
    %0 = arith.muli %arg0, %c1_i32 : i32
    %1 = arith.addi %0, %arg1 : i32
    %c0_i32 = arith.constant 0 : i32
    %c0_i32_0 = arith.constant 0 : i32
    %c0_i32_1 = arith.constant 0 : i32
    return %1, %c0_i32, %c0_i32_0 : i32, i32, i32
  }
}

</mosaic_0001>

<llo_original>
// kernel: tpu_custom_call.1
$region0: #{tpu_custom_call.1}
  #allocation0 [shape = 'u32[]', space=smem, size = 0x4, offset = 0x4, fixed_abs, tag = 'smem constant byte address 0x4 - core index']
  #allocation1 [shape = 'u32[72,128]{1,0:T(1,128)}', space=vmem, size = 0x9000, scoped, tag = 'internal scratch']
  %s0 = inlined_call_operand.hbm [shape: f32[2,4,256], index: 0, kind: input, shape index: {}]
  %s1 = inlined_call_operand.hbm [shape: s32[2,1,256], index: 1, kind: input, shape index: {}]
  %s2 = inlined_call_operand.hbm [shape: f32[1,1,256], index: 2, kind: output, shape index: {}]
  %s3 = sld [smem:[#allocation0]]
  $region30: #{tpu_custom_call.1} parent=0
    _
  %s5 = ssub.s32 1, %s3
  %s6 = scalar_select 0, %s5, %s3
  $region1: #{tpu_custom_call.1} parent=0
    #allocation2 [shape = 'u8[8192]{0}', space=vmem, size = 0x2000, scoped, tag = 'input window, operand 0, single buffered']
    #allocation3 [shape = 's32[1]{0}', space=sflag, size = 0x4, scoped, tag = 'scoped memory for tpu_custom_call.1']
    #allocation4 [shape = 's32[1]{0}', space=sflag, size = 0x4, scoped, tag = 'scoped memory for tpu_custom_call.1']
    #allocation5 [shape = 'u8[2048]{0}', space=vmem, size = 0x800, scoped, tag = 'input window, operand 1, single buffered']
    #allocation6 [shape = 's32[1]{0}', space=sflag, size = 0x4, scoped, tag = 'scoped memory for tpu_custom_call.1']
    #allocation7 [shape = 'u8[1024]{0}', space=vmem, size = 0x400, scoped, tag = 'output window, operand 0, single buffered']
    %7 = vsyncpa [#allocation3], 0
    %8 = vsyncpa [#allocation6], 0
    %9 = vsyncpa [#allocation4], 0
    // Predicated region
    $region2: #{tpu_custom_call.1} parent=1 // pred_check
      _
    $region3: #{tpu_custom_call.1} parent=1 // pred_check_branch
      %11 = sbr.rel (0) target = $region5
    $region4: #{tpu_custom_call.1} parent=1 // pred_region
      %13 = vsyncadd [#allocation3], 0
      %s14 = sshll.u32 %s0, 4
      %s15 = int_to_ptr.hbm [resolvable:$true] %s14
      %s16 = sshll.u32 [#allocation2], 4
      %s17 = int_to_ptr.vmem [resolvable:$true] %s16
      %22 = dma.hbm_to_vmem [thread:$0]  %s15, 256, %s17, [#allocation3], 128, 128, 8
    $region5: #{tpu_custom_call.1} parent=1 // pred_fallthru
      _
    // Predicated region
    $region6: #{tpu_custom_call.1} parent=1 // pred_check
      _
    $region7: #{tpu_custom_call.1} parent=1 // pred_check_branch
      %24 = sbr.rel (0) target = $region9
    $region8: #{tpu_custom_call.1} parent=1 // pred_region
      %26 = vsyncadd [#allocation6], 0
      %s27 = sshll.u32 %s1, 4
      %s28 = int_to_ptr.hbm [resolvable:$true] %s27
      %s29 = sshll.u32 [#allocation5], 4
      %s30 = int_to_ptr.vmem [resolvable:$true] %s29
      %35 = dma.hbm_to_vmem [thread:$0]  %s28, 64, %s30, [#allocation6], 32, 32, 2
    $region9: #{tpu_custom_call.1} parent=1 // pred_fallthru
      _
    // Predicated region
    $region10: #{tpu_custom_call.1} parent=1 // pred_check
      _
    $region11: #{tpu_custom_call.1} parent=1 // pred_check_branch
      %37 = sbr.rel (0) target = $region13
    $region12: #{tpu_custom_call.1} parent=1 // pred_region
      %39 = dma.done [#allocation3], 256
    $region13: #{tpu_custom_call.1} parent=1 // pred_fallthru
      _
    // Predicated region
    $region14: #{tpu_custom_call.1} parent=1 // pred_check
      _
    $region15: #{tpu_custom_call.1} parent=1 // pred_check_branch
      %41 = sbr.rel (0) target = $region17
    $region16: #{tpu_custom_call.1} parent=1 // pred_region
      %43 = dma.done [#allocation6], 64
    $region17: #{tpu_custom_call.1} parent=1 // pred_fallthru
      _
    %s44 = sadd.s32 0, 0
    %p45 = scmp.eq.s32.totalorder 0, 0
    // Predicated region
    $region18: #{tpu_custom_call.1} parent=1 // pred_check
      %p46 = pneg %p45
    $region19: #{tpu_custom_call.1} parent=1 // pred_check_branch
      %48 = sbr.rel (%p46) target = $region21
    $region20: #{tpu_custom_call.1} parent=1 // pred_region
      %v49 = vlaneseq
      %vm50 = vcmp.ge.s32.totalorder %v49, 0
      %vm51 = vcmp.lt.s32.totalorder %v49, 256
      %vm52 = vmand %vm50, %vm51
      %53 = vst.msk [vmem:[#allocation7] sm:$0x3] %vm52, 0.0
    $region21: #{tpu_custom_call.1} parent=1 // pred_fallthru
      _
    %v54 = vld [vmem:[#allocation2] sm:$0xff]
    %v55 = vld [vmem:[#allocation2 + $0x8] sm:$0xff]
    %v56 = vld [vmem:[#allocation5] sm:$0x3]
    %v57 = vld [vmem:[#allocation5 + $0x2] sm:$0x3]
    %s58 = sadd.s32 0, 0
    %s59 = smul.u32 %s58, 256
    %v60 = vlaneseq
    %v61 = vand.u32 %v60, 127
    %v62 = vadd.s32 %v61, 128
    %v63 = vstv %s59
    %v64 = vadd.s32 %v63, %v61
    %v65 = vadd.s32 %v63, %v62
    %vm66 = vcmp.lt.s32.totalorder %v64, 256
    %vm67 = vcmp.lt.s32.totalorder %v65, 256
    %vm68 = vcmp.ne.s32.totalorder %v56, 4294967196
    %vm69 = vcmp.ne.s32.totalorder %v57, 4294967196
    %v70 = vsel %vm66, 1, 0
    %v71 = vsel %vm67, 1, 0
    %vm72 = vcmp.eq.s32.totalorder %v70, 1
    %vm73 = vcmp.eq.s32.totalorder %v71, 1
    %v74 = vsel %vm68, 1, 0
    %v75 = vsel %vm69, 1, 0
    %v76 = vperm.slane %v74, 0
    %v77 = vperm.slane %v74, 1
    %v78 = vperm.slane %v75, 0
    %v79 = vperm.slane %v75, 1
    %vm80 = vcmp.ne.s32.totalorder %v76, 0
    %vm81 = vcmp.ne.s32.totalorder %v77, 0
    %vm82 = vcmp.ne.s32.totalorder %v78, 0
    %vm83 = vcmp.ne.s32.totalorder %v79, 0
    %vm84 = vmand %vm72, %vm80
    %vm85 = vmand %vm73, %vm81
    %vm86 = vmand %vm72, %vm82
    %vm87 = vmand %vm73, %vm83
    %90 = vst [vmem:[#allocation1] ss:$2 sm:$0xff] %v54
    %v91 = vld.sshfl [vmem:[#allocation1] sm:$0xff pattern:$0x75316420]
    %v92 = vld.sshfl [vmem:[#allocation1 + $0x8] sm:$0xff pattern:$0x75316420]
    %s93 = scalar_lea.vmem [#allocation1], 16
    %94 = vst [vmem:[%s93] ss:$2 sm:$0xff] %v55
    %v95 = vld.sshfl [vmem:[#allocation1 + $0x10] sm:$0xff pattern:$0x75316420]
    %v96 = vld.sshfl [vmem:[#allocation1 + $0x18] sm:$0xff pattern:$0x75316420]
    %vm101 = vcmask 1043456
    %v102 = vsel %vm101, %v91, -inf
    %v103 = vrot.slane %v102, 4
    %v104 = vmax.f32 %v102, %v103
    %v105 = vrot.slane %v104, 2
    %v106 = vmax.f32 %v104, %v105
    %v107 = vrot.slane %v106, 1
    %v108 = vmax.f32 %v106, %v107
    %v109 = vsel %vm101, %v92, -inf
    %v110 = vrot.slane %v109, 4
    %v111 = vmax.f32 %v109, %v110
    %v112 = vrot.slane %v111, 2
    %v113 = vmax.f32 %v111, %v112
    %v114 = vrot.slane %v113, 1
    %v115 = vmax.f32 %v113, %v114
    %v116 = vsel %vm101, %v95, -inf
    %v117 = vrot.slane %v116, 4
    %v118 = vmax.f32 %v116, %v117
    %v119 = vrot.slane %v118, 2
    %v120 = vmax.f32 %v118, %v119
    %v121 = vrot.slane %v120, 1
    %v122 = vmax.f32 %v120, %v121
    %v123 = vsel %vm101, %v96, -inf
    %v124 = vrot.slane %v123, 4
    %v125 = vmax.f32 %v123, %v124
    %v126 = vrot.slane %v125, 2
    %v127 = vmax.f32 %v125, %v126
    %v128 = vrot.slane %v127, 1
    %v129 = vmax.f32 %v127, %v128
    %v134 = vrot.slane %v115, 4
    %v135 = vrot.slane %v129, 4
    %v136 = vsel %vm101, %v108, %v134
    %v137 = vsel %vm101, %v122, %v135
    %v140 = vsub.f32 %v54, %v136
    %v141 = vsub.f32 %v55, %v137
    %v142 = vmul.f32 %v140, 1.442695
    %v143 = vpow.pop %v142
    %v144 = vmul.f32 %v141, 1.442695
    %v145 = vpow.pop %v144
    %148 = vst [vmem:[#allocation1] ss:$2 sm:$0xff] %v143
    %v149 = vld.sshfl [vmem:[#allocation1] sm:$0xff pattern:$0x75316420]
    %v150 = vld.sshfl [vmem:[#allocation1 + $0x8] sm:$0xff pattern:$0x75316420]
    %s151 = scalar_lea.vmem [#allocation1], 16
    %152 = vst [vmem:[%s151] ss:$2 sm:$0xff] %v145
    %v153 = vld.sshfl [vmem:[#allocation1 + $0x10] sm:$0xff pattern:$0x75316420]
    %v154 = vld.sshfl [vmem:[#allocation1 + $0x18] sm:$0xff pattern:$0x75316420]
    %v159 = vsel %vm101, %v149, 0.0
    %v160 = vrot.slane %v159, 4
    %v161 = vadd.f32 %v159, %v160
    %v162 = vrot.slane %v161, 2
    %v163 = vadd.f32 %v161, %v162
    %v164 = vrot.slane %v163, 1
    %v165 = vadd.f32 %v163, %v164
    %v166 = vsel %vm101, %v150, 0.0
    %v167 = vrot.slane %v166, 4
    %v168 = vadd.f32 %v166, %v167
    %v169 = vrot.slane %v168, 2
    %v170 = vadd.f32 %v168, %v169
    %v171 = vrot.slane %v170, 1
    %v172 = vadd.f32 %v170, %v171
    %v173 = vsel %vm101, %v153, 0.0
    %v174 = vrot.slane %v173, 4
    %v175 = vadd.f32 %v173, %v174
    %v176 = vrot.slane %v175, 2
    %v177 = vadd.f32 %v175, %v176
    %v178 = vrot.slane %v177, 1
    %v179 = vadd.f32 %v177, %v178
    %v180 = vsel %vm101, %v154, 0.0
    %v181 = vrot.slane %v180, 4
    %v182 = vadd.f32 %v180, %v181
    %v183 = vrot.slane %v182, 2
    %v184 = vadd.f32 %v182, %v183
    %v185 = vrot.slane %v184, 1
    %v186 = vadd.f32 %v184, %v185
    %v187 = vlog2.pop %v165
    %v188 = vmul.f32 %v187, 0.6931472
    %v189 = vlog2.pop %v172
    %v190 = vmul.f32 %v189, 0.6931472
    %v191 = vlog2.pop %v179
    %v192 = vmul.f32 %v191, 0.6931472
    %v193 = vlog2.pop %v186
    %v194 = vmul.f32 %v193, 0.6931472
    %v195 = vadd.f32 %v108, %v188
    %v196 = vadd.f32 %v115, %v190
    %v197 = vadd.f32 %v122, %v192
    %v198 = vadd.f32 %v129, %v194
    %v199 = vlaneseq
    %v200 = vshrl.u32 %v199, 7
    %v201 = vperm.slane %v56, 0
    %v202 = vperm.slane %v56, 1
    %v203 = vperm.slane %v57, 0
    %v204 = vperm.slane %v57, 1
    %vm205 = vcmp.eq.s32.totalorder %v200, %v201
    %vm206 = vcmp.eq.s32.totalorder %v200, %v202
    %vm207 = vcmp.eq.s32.totalorder %v200, %v203
    %vm208 = vcmp.eq.s32.totalorder %v200, %v204
    %209 = vst [vmem:[#allocation1] ss:$2 sm:$0xff] %v54
    %v210 = vld.sshfl [vmem:[#allocation1] sm:$0xff pattern:$0x75316420]
    %v211 = vld.sshfl [vmem:[#allocation1 + $0x8] sm:$0xff pattern:$0x75316420]
    %s212 = scalar_lea.vmem [#allocation1], 16
    %213 = vst [vmem:[%s212] ss:$2 sm:$0xff] %v55
    %v214 = vld.sshfl [vmem:[#allocation1 + $0x10] sm:$0xff pattern:$0x75316420]
    %v215 = vld.sshfl [vmem:[#allocation1 + $0x18] sm:$0xff pattern:$0x75316420]
    %v220 = vsel %vm205, %v210, 0.0
    %v221 = vsel %vm206, %v211, 0.0
    %v222 = vsel %vm207, %v214, 0.0
    %v223 = vsel %vm208, %v215, 0.0
    %v224 = vsel %vm101, %v220, 0.0
    %v225 = vrot.slane %v224, 4
    %v226 = vadd.f32 %v224, %v225
    %v227 = vrot.slane %v226, 2
    %v228 = vadd.f32 %v226, %v227
    %v229 = vrot.slane %v228, 1
    %v230 = vadd.f32 %v228, %v229
    %v231 = vsel %vm101, %v221, 0.0
    %v232 = vrot.slane %v231, 4
    %v233 = vadd.f32 %v231, %v232
    %v234 = vrot.slane %v233, 2
    %v235 = vadd.f32 %v233, %v234
    %v236 = vrot.slane %v235, 1
    %v237 = vadd.f32 %v235, %v236
    %v238 = vsel %vm101, %v222, 0.0
    %v239 = vrot.slane %v238, 4
    %v240 = vadd.f32 %v238, %v239
    %v241 = vrot.slane %v240, 2
    %v242 = vadd.f32 %v240, %v241
    %v243 = vrot.slane %v242, 1
    %v244 = vadd.f32 %v242, %v243
    %v245 = vsel %vm101, %v223, 0.0
    %v246 = vrot.slane %v245, 4
    %v247 = vadd.f32 %v245, %v246
    %v248 = vrot.slane %v247, 2
    %v249 = vadd.f32 %v247, %v248
    %v250 = vrot.slane %v249, 1
    %v251 = vadd.f32 %v249, %v250
    %v252 = vsub.f32 %v195, %v230
    %v253 = vsub.f32 %v196, %v237
    %v254 = vsub.f32 %v197, %v244
    %v255 = vsub.f32 %v198, %v251
    %v256 = vsel %vm84, %v252, 0.0
    %v257 = vsel %vm85, %v253, 0.0
    %v258 = vsel %vm86, %v254, 0.0
    %v259 = vsel %vm87, %v255, 0.0
    %v260 = vsel %vm84, 1, 0
    %v261 = vsel %vm85, 1, 0
    %v262 = vsel %vm86, 1, 0
    %v263 = vsel %vm87, 1, 0
    %v264 = vcvt.s32.f32 %v260
    %v265 = vcvt.s32.f32 %v261
    %v266 = vcvt.s32.f32 %v262
    %v267 = vcvt.s32.f32 %v263
    %v268 = vadd.f32 %v256, %v257
    %v269 = vadd.f32 %v258, %v259
    %v272 = vrot.slane %v269, 7
    %vm273 = vcmask 1041409
    %v274 = vsel %vm273, %v272, %v268
    %vm276 = vcmask 1041408
    %v277 = vsel %vm276, %v274, 0.0
    %v278 = vrot.slane %v277, 4
    %v279 = vadd.f32 %v277, %v278
    %v280 = vrot.slane %v279, 2
    %v281 = vadd.f32 %v279, %v280
    %v282 = vrot.slane %v281, 1
    %v283 = vadd.f32 %v281, %v282
    %v284 = vadd.f32 %v264, %v265
    %v285 = vadd.f32 %v266, %v267
    %v288 = vrot.slane %v285, 7
    %v289 = vsel %vm273, %v288, %v284
    %v291 = vsel %vm276, %v289, 0.0
    %v292 = vrot.slane %v291, 4
    %v293 = vadd.f32 %v291, %v292
    %v294 = vrot.slane %v293, 2
    %v295 = vadd.f32 %v293, %v294
    %v296 = vrot.slane %v295, 1
    %v297 = vadd.f32 %v295, %v296
    %v298 = vld [vmem:[#allocation7] sm:$0x3]
    %v301 = vrot.slane %v297, 7
    %vm302 = vcmask 1040384
    %v303 = vsel %vm302, %v283, %v301
    %v305 = vadd.f32 %v298, %v303
    %v306 = vlaneseq
    %vm307 = vcmp.ge.s32.totalorder %v306, 0
    %vm308 = vcmp.lt.s32.totalorder %v306, 256
    %vm309 = vmand %vm307, %vm308
    %310 = vst.msk [vmem:[#allocation7] sm:$0x3] %vm309, %v305
    // Predicated region
    $region22: #{tpu_custom_call.1} parent=1 // pred_check
      _
    $region23: #{tpu_custom_call.1} parent=1 // pred_check_branch
      %312 = sbr.rel (0) target = $region25
    $region24: #{tpu_custom_call.1} parent=1 // pred_region
      %s313 = sadd.s32 0, 0
      %315 = vsyncadd [#allocation4], 0
      %s316 = smul.addr %s313, 2
      %s317 = scalar_lea.hbm %s2, %s316
      %s319 = sshll.u32 [#allocation7], 4
      %s320 = int_to_ptr.vmem [resolvable:$true] %s319
      %s321 = sshll.u32 %s317, 4
      %s322 = int_to_ptr.hbm [resolvable:$true] %s321
      %324 = dma.vmem_to_hbm [thread:$0]  %s320, 32, %s322, [#allocation4]
    $region25: #{tpu_custom_call.1} parent=1 // pred_fallthru
      _
    // Predicated region
    $region26: #{tpu_custom_call.1} parent=1 // pred_check
      _
    $region27: #{tpu_custom_call.1} parent=1 // pred_check_branch
      %326 = sbr.rel (0) target = $region29
    $region28: #{tpu_custom_call.1} parent=1 // pred_region
      %328 = dma.done [#allocation4], 32
    $region29: #{tpu_custom_call.1} parent=1 // pred_fallthru
      _
    %329 = vsyncpa [#allocation3], 1
    %330 = vsyncpa [#allocation6], 1
    %331 = vsyncpa [#allocation4], 1

</llo_original>
